<compile_context>
chip_gen: v7x
topology: tpu7x:2x2x1
jax: 0.10.0
libtpu: 0.0.40
codegen_flags: <defaults>
</compile_context>

<pallas_src>
import functools

import jax
import jax.numpy as jnp
from jax import lax
from jax.experimental import pallas as pl
from jax.experimental.pallas import tpu as pltpu

LATENT_DIM = 100
VMEM_LIMIT = 48 * 1024 * 1024          # fits v7x (64 MiB physical VMEM)


# ----------------------------- Pallas kernels ------------------------------ #

def _linear_leaky_kernel(z_ref, w_ref, b_ref, o_ref):
    # z: (B, LATENT_DIM) bf16, w: (LATENT_DIM, OUT) bf16, b: (1, OUT) f32
    y = jnp.dot(z_ref[...], w_ref[...], preferred_element_type=jnp.float32)
    y = y + b_ref[...]
    o_ref[...] = jnp.where(y > 0.0, y, 0.2 * y).astype(o_ref.dtype)


def _convt_phase_kernel(x_ref, w_ref, b_ref, o_ref, xs_ref, *, H, W, TM, act):
    """Sub-pixel (phase) ConvTranspose2d(k=5, s=2, p=2, op=1) + activation.

    x_ref : (bt, H+2, W+2, Cin) bf16  zero-padded input (pad 1 per side)
    w_ref : (3, 3, Cin, TP)     bf16  phase weights (TP = phase-group * Cout)
    b_ref : (1, TP)             f32   phase-tiled bias
    o_ref : (bt, H*W, TP)             phase outputs, row-major over (H, W)
    xs_ref: (3, (H+2)*W, Cin)   bf16  scratch: the 3 column-shifted copies
    """
    bt, Hp, _, Cin = x_ref.shape
    TP = w_ref.shape[-1]
    M = H * W
    n_tiles = M // TM

    for n in range(bt):
        # Hoisted sublane shifts: build the 3 column-shifted, row-flattened
        # copies once per element (replaces the per-tap slice+reshape relayouts).
        for b in range(3):
            xs_ref[b] = x_ref[n, :, b:b + W, :].reshape(Hp * W, Cin)

        def tile(m0):
            # (TM, TP) f32 accumulator stays resident in vregs.
            acc = jnp.zeros((TM, TP), jnp.float32)
            for a in range(3):                       # 9 aligned-band matmuls
                row0 = a * W
                for b in range(3):
                    patch = xs_ref[b, pl.ds(m0 + row0, TM), :]
                    acc = acc + jnp.dot(patch, w_ref[a, b],
                                        preferred_element_type=jnp.float32)
            y = acc + b_ref[...]
            if act == "leaky":
                y = jnp.where(y > 0.0, y, 0.2 * y)
            else:                                    # "tanh"
                y = jnp.tanh(y)
            o_ref[n, pl.ds(m0, TM), :] = y.astype(o_ref.dtype)

        if n_tiles <= 4:                             # small layers: unroll
            for t in range(n_tiles):
                tile(t * TM)
        else:                                        # big layers: rolled loop
            def body(t, carry):
                tile(pl.multiple_of(t * TM, TM))
                return carry
            lax.fori_loop(0, n_tiles, body, 0)


# ------------------------------ JAX wrappers ------------------------------- #

def _largest_divisor_leq(n, cap):
    c = max(1, min(n, cap))
    while n % c:
        c -= 1
    return c


def _conv_tiles(B, H, W, Cin, Cout):
    # Output-channel tile: largest phase group whose bf16 weight block <=~10MiB.
    TP = Cout
    for k in (4, 2):
        if 9 * Cin * k * Cout * 2 <= 10 * 1024 * 1024:
            TP = k * Cout
            break
    # Batch elements per grid step (amortize ~0.35us/step on the tiny layers).
    bt = _largest_divisor_leq(B, 8 if H <= 4 else (4 if H <= 32 else 2))
    # Output-row band so the f32 accumulator tile stays ~<=64KiB of vregs.
    k = max(1, min(H, 16384 // (W * max(TP, 128))))
    while H % k:
        k -= 1
    return TP, bt, k * W


def conv_transpose_phase(x, wp, bp, act, out_dtype):
    """ConvTranspose2d(Cin, Cout, 5, stride=2, padding=2, output_padding=1)+act."""
    B, H, W, Cin = x.shape
    P = wp.shape[-1]
    Cout = P // 4
    Hp, Wp = H + 2, W + 2
    M = H * W
    TP, bt, TM = _conv_tiles(B, H, W, Cin, Cout)

    xpad = jnp.pad(x.astype(jnp.bfloat16), ((0, 0), (1, 1), (1, 1), (0, 0)))
    kernel = functools.partial(_convt_phase_kernel, H=H, W=W, TM=TM, act=act)
    y = pl.pallas_call(
        kernel,
        out_shape=jax.ShapeDtypeStruct((B, M, P), out_dtype),
        grid_spec=pltpu.PrefetchScalarGridSpec(
            num_scalar_prefetch=0,
            grid=(P // TP, B // bt),     # batch fastest: weight block stays put
            in_specs=[
                pl.BlockSpec((bt, Hp, Wp, Cin), lambda pi, bi: (bi, 0, 0, 0)),
                pl.BlockSpec((3, 3, Cin, TP), lambda pi, bi: (0, 0, 0, pi)),
                pl.BlockSpec((1, TP), lambda pi, bi: (0, pi)),
            ],
            out_specs=pl.BlockSpec((bt, M, TP), lambda pi, bi: (bi, 0, pi)),
            scratch_shapes=[pltpu.VMEM((3, Hp * W, Cin), jnp.bfloat16)],
        ),
        compiler_params=pltpu.CompilerParams(
            dimension_semantics=("parallel", "parallel"),
            vmem_limit_bytes=VMEM_LIMIT),
    )(xpad, wp, bp)

    # De-interleave phases (ee, eo, oe, oo) into the (2H, 2W) image (glue).
    # TODO(synk): the Cout=1 final layer still writes a lane-sparse (M, 4)
    # block; a transposed (4, M) in-kernel write would give unmasked stores.
    y = y.reshape(B, H, W, 2, 2, Cout).transpose(0, 1, 3, 2, 4, 5)
    return y.reshape(B, 2 * H, 2 * W, Cout)


def linear_leaky(z, wt, b2):
    # torch nn.Linear (y = z @ w.T + b) fused with LeakyReLU(0.2).
    B = z.shape[0]
    out = wt.shape[1]
    return pl.pallas_call(
        _linear_leaky_kernel,
        out_shape=jax.ShapeDtypeStruct((B, out), jnp.bfloat16),
        grid=(1,),
        in_specs=[
            pl.BlockSpec((B, LATENT_DIM), lambda i: (0, 0)),
            pl.BlockSpec((LATENT_DIM, out), lambda i: (0, 0)),
            pl.BlockSpec((1, out), lambda i: (0, 0)),
        ],
        out_specs=pl.BlockSpec((B, out), lambda i: (0, 0)),
        compiler_params=pltpu.CompilerParams(
            dimension_semantics=("arbitrary",),
            vmem_limit_bytes=VMEM_LIMIT),
    )(z, wt, b2)


# --------------------------- parameter preparation -------------------------- #

def _phase_weight(w):
    """torch (Cin, Cout, 5, 5) ConvTranspose2d weight -> (3, 3, Cin, 4*Cout)
    phase weights over a (1,1)-padded input.  Phase order: ee, eo, oe, oo."""
    cin, cout = w.shape[:2]
    zero = jnp.zeros((cin, cout), jnp.float32)

    def tap(a, b, dr, dc):
        kh = 4 - 2 * a if dr == 0 else 5 - 2 * a
        kw = 4 - 2 * b if dc == 0 else 5 - 2 * b
        if not (0 <= kh <= 4 and 0 <= kw <= 4):
            return zero
        return w[:, :, kh, kw]

    rows = []
    for a in range(3):
        cols = []
        for b in range(3):
            phases = [tap(a, b, dr, dc) for dr in (0, 1) for dc in (0, 1)]
            cols.append(jnp.concatenate(phases, axis=1))       # (Cin, 4*Cout)
        rows.append(jnp.stack(cols, axis=0))
    return jnp.stack(rows, axis=0).astype(jnp.bfloat16)         # (3,3,Cin,4Cout)


def init_params(key, d):
    chans = [16 * d, 8 * d, 4 * d, 2 * d, d, 1]
    keys = jax.random.split(key, 12)
    p = {"d": d}
    p["lin_w"] = 0.05 * jax.random.normal(keys[0], (256 * d, LATENT_DIM),
                                          jnp.float32)
    p["lin_b"] = 0.05 * jax.random.normal(keys[1], (256 * d,), jnp.float32)
    # Kernel-side copies, pre-arranged once at init (per perf feedback).
    p["lin_wt"] = jnp.transpose(p["lin_w"]).astype(jnp.bfloat16)
    p["lin_b2"] = p["lin_b"].reshape(1, -1)
    for i in range(5):
        cin, cout = chans[i], chans[i + 1]
        w = 0.05 * jax.random.normal(keys[2 + 2 * i], (cin, cout, 5, 5),
                                     jnp.float32)
        b = 0.05 * jax.random.normal(keys[3 + 2 * i], (cout,), jnp.float32)
        p[f"w{i}"], p[f"b{i}"] = w, b
        p[f"wp{i}"] = _phase_weight(w)
        p[f"bp{i}"] = jnp.tile(b, 4).reshape(1, 4 * cout)
    return p


# --------------------------------- forward --------------------------------- #

def generator_forward(z, params):
    d = params["d"]
    z = z.reshape((-1, LATENT_DIM)).astype(jnp.bfloat16)
    h = linear_leaky(z, params["lin_wt"], params["lin_b2"])        # (B, 256d)
    B = h.shape[0]
    # nn.Unflatten(1, (16d, 4, 4)) is NCHW; kernels run NHWC.
    # TODO(synk): the linear + first tiny conv layers could be fused into one
    # pallas_call to avoid the small-layer HBM round trips.
    x = h.reshape(B, 16 * d, 4, 4).transpose(0, 2, 3, 1)
    for i in range(5):
        last = i == 4
        x = conv_transpose_phase(x, params[f"wp{i}"], params[f"bp{i}"],
                                 act="tanh" if last else "leaky",
                                 out_dtype=jnp.float32 if last else jnp.bfloat16)
    return x.transpose(0, 3, 1, 2)                                 # NHWC->NCHW


# ------------------------- pure-JAX reference check ------------------------ #

def ref_forward(z, params):
    # Mirrors the kernel's precision strategy (bf16 operands, f32 accumulate).
    d = params["d"]
    z = z.reshape((-1, LATENT_DIM)).astype(jnp.bfloat16)
    w = params["lin_w"].astype(jnp.bfloat16)
    y = jnp.dot(z, w.T, preferred_element_type=jnp.float32) + params["lin_b"]
    y = jnp.where(y > 0, y, 0.2 * y).astype(jnp.bfloat16)
    x = y.reshape(-1, 16 * d, 4, 4).transpose(0, 2, 3, 1)
    for i in range(5):
        wt = params[f"w{i}"]
        w_conv = jnp.transpose(wt[:, :, ::-1, ::-1],
                               (2, 3, 0, 1)).astype(jnp.bfloat16)
        x = lax.conv_general_dilated(
            x, w_conv, window_strides=(1, 1), padding=((2, 3), (2, 3)),
            lhs_dilation=(2, 2), dimension_numbers=("NHWC", "HWIO", "NHWC"),
            preferred_element_type=jnp.float32)
        x = x + params[f"b{i}"]
        if i < 4:
            x = jnp.where(x > 0, x, 0.2 * x).astype(jnp.bfloat16)
        else:
            x = jnp.tanh(x)
    return x.transpose(0, 3, 1, 2)


if __name__ == "__main__":
    d = 8                   # small width for testing (PyTorch default is d=64)
    B = 2
    key = jax.random.PRNGKey(0)
    pkey, zkey = jax.random.split(key)
    params = init_params(pkey, d)
    z = jax.random.normal(zkey, (B, LATENT_DIM), jnp.float32)

    out = jax.block_until_ready(generator_forward(z, params))
    assert out.shape == (B, 1, 128, 128), out.shape

    ref = jax.block_until_ready(ref_forward(z, params))
    err = float(jnp.max(jnp.abs(out - ref)))
    assert err < 5e-3, f"max abs err {err}"
    print("KERNEL_OK")
</pallas_src>

<mosaic_0001>
module attributes {stable_mosaic.version = 11 : i64} {
  func.func @_linear_leaky_kernel(%arg0: i32, %arg1: memref<2x100xbf16, #tpu.memory_space<vmem>>, %arg2: memref<100x2048xbf16, #tpu.memory_space<vmem>>, %arg3: memref<1x2048xf32, #tpu.memory_space<vmem>>, %arg4: memref<2x2048xbf16, #tpu.memory_space<vmem>>) attributes {dimension_semantics = [#tpu.dimension_semantics<arbitrary>], iteration_bounds = array<i64: 1>, scalar_prefetch = 0 : i64, scratch_operands = 0 : i64, tpu.core_type = #tpu.core_type<tc>, window_params = [{pipeline_mode = #tpu.pipeline_mode<synchronous>, transform_indices = @transform_0, window_bounds = array<i64: 2, 100>}, {pipeline_mode = #tpu.pipeline_mode<synchronous>, transform_indices = @transform_1, window_bounds = array<i64: 100, 2048>}, {pipeline_mode = #tpu.pipeline_mode<synchronous>, transform_indices = @transform_2, window_bounds = array<i64: 1, 2048>}, {pipeline_mode = #tpu.pipeline_mode<synchronous>, transform_indices = @transform_3, window_bounds = array<i64: 2, 2048>}]} {
    %c0 = arith.constant 0 : index
    %c0_0 = arith.constant 0 : index
    %0 = vector.load %arg1[%c0, %c0_0] : memref<2x100xbf16, #tpu.memory_space<vmem>>, vector<2x100xbf16>
    %c0_1 = arith.constant 0 : index
    %c0_2 = arith.constant 0 : index
    %1 = vector.load %arg2[%c0_1, %c0_2] : memref<100x2048xbf16, #tpu.memory_space<vmem>>, vector<100x2048xbf16>
    %cst = arith.constant dense<0.000000e+00> : vector<2x2048xf32>
    %2 = tpu.matmul %0, %1, %cst {dimension_numbers = #tpu.dot_dimension_numbers<[1], [0], [0], [1], [0, 0, 1, 1], [], []>} : vector<2x100xbf16>, vector<100x2048xbf16>, vector<2x2048xf32> -> vector<2x2048xf32>
    %c0_3 = arith.constant 0 : index
    %c0_4 = arith.constant 0 : index
    %3 = vector.load %arg3[%c0_3, %c0_4] : memref<1x2048xf32, #tpu.memory_space<vmem>>, vector<1x2048xf32>
    %4 = vector.broadcast %3 : vector<1x2048xf32> to vector<2x2048xf32>
    %5 = arith.addf %2, %4 : vector<2x2048xf32>
    %cst_5 = arith.constant 0.000000e+00 : f32
    %6 = vector.broadcast %cst_5 : f32 to vector<2x2048xf32>
    %7 = arith.cmpf ogt, %5, %6 : vector<2x2048xf32>
    %cst_6 = arith.constant 2.000000e-01 : f32
    %8 = vector.broadcast %cst_6 : f32 to vector<2x2048xf32>
    %9 = arith.mulf %8, %5 : vector<2x2048xf32>
    %10 = arith.select %7, %5, %9 : vector<2x2048xi1>, vector<2x2048xf32>
    %11 = arith.truncf %10 : vector<2x2048xf32> to vector<2x2048xbf16>
    %c0_7 = arith.constant 0 : index
    %c0_8 = arith.constant 0 : index
    %12 = vector.load %arg4[%c0_7, %c0_8] : memref<2x2048xbf16, #tpu.memory_space<vmem>>, vector<2x2048xbf16>
    tpu.vector_store %arg4[%c0_7, %c0_8], %11 {strides = array<i32>} : memref<2x2048xbf16, #tpu.memory_space<vmem>>, vector<2x2048xbf16>,
    return
  }
  func.func @transform_0(%arg0: i32) -> (i32, i32) {
    %c0_i32 = arith.constant 0 : i32
    %c0_i32_0 = arith.constant 0 : i32
    %c0_i32_1 = arith.constant 0 : i32
    return %c0_i32, %c0_i32_0 : i32, i32
  }
  func.func @transform_1(%arg0: i32) -> (i32, i32) {
    %c0_i32 = arith.constant 0 : i32
    %c0_i32_0 = arith.constant 0 : i32
    %c0_i32_1 = arith.constant 0 : i32
    return %c0_i32, %c0_i32_0 : i32, i32
  }
  func.func @transform_2(%arg0: i32) -> (i32, i32) {
    %c0_i32 = arith.constant 0 : i32
    %c0_i32_0 = arith.constant 0 : i32
    %c0_i32_1 = arith.constant 0 : i32
    return %c0_i32, %c0_i32_0 : i32, i32
  }
  func.func @transform_3(%arg0: i32) -> (i32, i32) {
    %c0_i32 = arith.constant 0 : i32
    %c0_i32_0 = arith.constant 0 : i32
    %c0_i32_1 = arith.constant 0 : i32
    return %c0_i32, %c0_i32_0 : i32, i32
  }
}

</mosaic_0001>

<llo_original>
// kernel: tpu_custom_call.1
$region0: #{tpu_custom_call.1}
  #allocation0 [shape = 'u32[]', space=smem, size = 0x4, offset = 0x4, fixed_abs, tag = 'smem constant byte address 0x4 - core index']
  #allocation1 [shape = 'u32[144,128]{1,0:T(1,128)}', space=vmem, size = 0x12000, scoped, tag = 'internal scratch']
  %s0 = inlined_call_operand.hbm [shape: bf16[2,100], index: 0, kind: input, shape index: {}]
  %s1 = inlined_call_operand.hbm [shape: bf16[100,2048], index: 1, kind: input, shape index: {}]
  %s2 = inlined_call_operand.hbm [shape: f32[1,2048], index: 2, kind: input, shape index: {}]
  %s3 = inlined_call_operand.hbm [shape: bf16[2,2048], index: 3, kind: output, shape index: {}]
  %s4 = sld [smem:[#allocation0]]
  $region34: #{tpu_custom_call.1} parent=0
    _
  %s6 = ssub.s32 1, %s4
  %s7 = scalar_select 0, %s6, %s4
  $region1: #{tpu_custom_call.1} parent=0
    #allocation2 [shape = 'u8[512]{0}', space=vmem, size = 0x400, scoped, tag = 'input window, operand 0, single buffered']
    #allocation3 [shape = 's32[1]{0}', space=sflag, size = 0x4, scoped, tag = 'scoped memory for tpu_custom_call.1']
    #allocation4 [shape = 's32[1]{0}', space=sflag, size = 0x4, scoped, tag = 'scoped memory for tpu_custom_call.1']
    #allocation5 [shape = 'u8[425984]{0}', space=vmem, size = 0x68000, scoped, tag = 'input window, operand 1, single buffered']
    #allocation6 [shape = 's32[1]{0}', space=sflag, size = 0x4, scoped, tag = 'scoped memory for tpu_custom_call.1']
    #allocation7 [shape = 'u8[8192]{0}', space=vmem, size = 0x2000, scoped, tag = 'input window, operand 2, single buffered']
    #allocation8 [shape = 'u8[8192]{0}', space=vmem, size = 0x2000, scoped, tag = 'output window, operand 0, single buffered']
    %8 = vsyncpa [#allocation3], 0
    %9 = vsyncpa [#allocation6], 0
    %10 = vsyncpa [#allocation4], 0
    // Predicated region
    $region2: #{tpu_custom_call.1} parent=1 // pred_check
      _
    $region3: #{tpu_custom_call.1} parent=1 // pred_check_branch
      %12 = sbr.rel (0) target = $region5
    $region4: #{tpu_custom_call.1} parent=1 // pred_region
      %s14 = ssub.s32 16, 16
      %15 = vsyncadd [#allocation3], %s14
      %s17 = sshll.u32 [#allocation2], 4
      %s18 = int_to_ptr.vmem [resolvable:$true] %s17
      %20 = dma.hbm_to_vmem [thread:$0]  %s0, 16, %s18, [#allocation3]
    $region5: #{tpu_custom_call.1} parent=1 // pred_fallthru
      _
    // Predicated region
    $region6: #{tpu_custom_call.1} parent=1 // pred_check
      _
    $region7: #{tpu_custom_call.1} parent=1 // pred_check_branch
      %22 = sbr.rel (0) target = $region9
    $region8: #{tpu_custom_call.1} parent=1 // pred_region
      %s24 = ssub.s32 13312, 13312
      %25 = vsyncadd [#allocation6], %s24
      %s26 = sshll.u32 [#allocation5], 4
      %s27 = int_to_ptr.vmem [resolvable:$true] %s26
      %32 = dma.hbm_to_vmem [thread:$0]  %s1, 13312, %s27, [#allocation6], 1024, 1024, 64
    $region9: #{tpu_custom_call.1} parent=1 // pred_fallthru
      _
    // Predicated region
    $region10: #{tpu_custom_call.1} parent=1 // pred_check
      _
    $region11: #{tpu_custom_call.1} parent=1 // pred_check_branch
      %34 = sbr.rel (0) target = $region13
    $region12: #{tpu_custom_call.1} parent=1 // pred_region
      %s36 = ssub.s32 256, 256
      %37 = vsyncadd [#allocation6], %s36
      %s39 = sshll.u32 [#allocation7], 4
      %s40 = int_to_ptr.vmem [resolvable:$true] %s39
      %42 = dma.hbm_to_vmem [thread:$0]  %s2, 256, %s40, [#allocation6]
    $region13: #{tpu_custom_call.1} parent=1 // pred_fallthru
      _
    // Predicated region
    $region14: #{tpu_custom_call.1} parent=1 // pred_check
      _
    $region15: #{tpu_custom_call.1} parent=1 // pred_check_branch
      %44 = sbr.rel (0) target = $region17
    $region16: #{tpu_custom_call.1} parent=1 // pred_region
      %45 = dma.done [#allocation3], 16
    $region17: #{tpu_custom_call.1} parent=1 // pred_fallthru
      _
    // Predicated region
    $region18: #{tpu_custom_call.1} parent=1 // pred_check
      _
    $region19: #{tpu_custom_call.1} parent=1 // pred_check_branch
      %47 = sbr.rel (0) target = $region21
    $region20: #{tpu_custom_call.1} parent=1 // pred_region
      %48 = dma.done [#allocation6], 13312
    $region21: #{tpu_custom_call.1} parent=1 // pred_fallthru
      _
    // Predicated region
    $region22: #{tpu_custom_call.1} parent=1 // pred_check
      _
    $region23: #{tpu_custom_call.1} parent=1 // pred_check_branch
      %50 = sbr.rel (0) target = $region25
    $region24: #{tpu_custom_call.1} parent=1 // pred_region
      %51 = dma.done [#allocation6], 256
    $region25: #{tpu_custom_call.1} parent=1 // pred_fallthru
      _
    %v53 = vld [vmem:[#allocation2] sm:$0x1]
    %v54 = vld [vmem:[#allocation5] sm:$0xff]
    %v55 = vld [vmem:[#allocation5 + $0x8] sm:$0xff]
    %v56 = vld [vmem:[#allocation5 + $0x10] sm:$0xff]
    %v57 = vld [vmem:[#allocation5 + $0x18] sm:$0xff]
    %v58 = vld [vmem:[#allocation5 + $0x20] sm:$0xff]
    %v59 = vld [vmem:[#allocation5 + $0x28] sm:$0xff]
    %v60 = vld [vmem:[#allocation5 + $0x30] sm:$0xff]
    %v61 = vld [vmem:[#allocation5 + $0x38] sm:$0xff]
    %v62 = vld [vmem:[#allocation5 + $0x40] sm:$0xff]
    %v63 = vld [vmem:[#allocation5 + $0x48] sm:$0xff]
    %v64 = vld [vmem:[#allocation5 + $0x50] sm:$0xff]
    %v65 = vld [vmem:[#allocation5 + $0x58] sm:$0xff]
    %v66 = vld [vmem:[#allocation5 + $0x60] sm:$0xff]
    %v67 = vld [vmem:[#allocation5 + $0x68] sm:$0xff]
    %v68 = vld [vmem:[#allocation5 + $0x70] sm:$0xff]
    %v69 = vld [vmem:[#allocation5 + $0x78] sm:$0xff]
    %v70 = vld [vmem:[#allocation5 + $0x80] sm:$0xff]
    %v71 = vld [vmem:[#allocation5 + $0x88] sm:$0xff]
    %v72 = vld [vmem:[#allocation5 + $0x90] sm:$0xff]
    %v73 = vld [vmem:[#allocation5 + $0x98] sm:$0xff]
    %v74 = vld [vmem:[#allocation5 + $0xa0] sm:$0xff]
    %v75 = vld [vmem:[#allocation5 + $0xa8] sm:$0xff]
    %v76 = vld [vmem:[#allocation5 + $0xb0] sm:$0xff]
    %v77 = vld [vmem:[#allocation5 + $0xb8] sm:$0xff]
    %v78 = vld [vmem:[#allocation5 + $0xc0] sm:$0xff]
    %v79 = vld [vmem:[#allocation5 + $0xc8] sm:$0xff]
    %v80 = vld [vmem:[#allocation5 + $0xd0] sm:$0xff]
    %v81 = vld [vmem:[#allocation5 + $0xd8] sm:$0xff]
    %v82 = vld [vmem:[#allocation5 + $0xe0] sm:$0xff]
    %v83 = vld [vmem:[#allocation5 + $0xe8] sm:$0xff]
    %v84 = vld [vmem:[#allocation5 + $0xf0] sm:$0xff]
    %v85 = vld [vmem:[#allocation5 + $0xf8] sm:$0xff]
    %v86 = vld [vmem:[#allocation5 + $0x100] sm:$0xff]
    %v87 = vld [vmem:[#allocation5 + $0x108] sm:$0xff]
    %v88 = vld [vmem:[#allocation5 + $0x110] sm:$0xff]
    %v89 = vld [vmem:[#allocation5 + $0x118] sm:$0xff]
    %v90 = vld [vmem:[#allocation5 + $0x120] sm:$0xff]
    %v91 = vld [vmem:[#allocation5 + $0x128] sm:$0xff]
    %v92 = vld [vmem:[#allocation5 + $0x130] sm:$0xff]
    %v93 = vld [vmem:[#allocation5 + $0x138] sm:$0xff]
    %v94 = vld [vmem:[#allocation5 + $0x140] sm:$0xff]
    %v95 = vld [vmem:[#allocation5 + $0x148] sm:$0xff]
    %v96 = vld [vmem:[#allocation5 + $0x150] sm:$0xff]
    %v97 = vld [vmem:[#allocation5 + $0x158] sm:$0xff]
    %v98 = vld [vmem:[#allocation5 + $0x160] sm:$0xff]
    %v99 = vld [vmem:[#allocation5 + $0x168] sm:$0xff]
    %v100 = vld [vmem:[#allocation5 + $0x170] sm:$0xff]
    %v101 = vld [vmem:[#allocation5 + $0x178] sm:$0xff]
    %v102 = vld [vmem:[#allocation5 + $0x180] sm:$0xff]
    %v103 = vld [vmem:[#allocation5 + $0x188] sm:$0xff]
    %v104 = vld [vmem:[#allocation5 + $0x190] sm:$0xff]
    %v105 = vld [vmem:[#allocation5 + $0x198] sm:$0xff]
    %v106 = vld [vmem:[#allocation5 + $0x1a0] sm:$0xff]
    %v107 = vld [vmem:[#allocation5 + $0x1a8] sm:$0xff]
    %v108 = vld [vmem:[#allocation5 + $0x1b0] sm:$0xff]
    %v109 = vld [vmem:[#allocation5 + $0x1b8] sm:$0xff]
    %v110 = vld [vmem:[#allocation5 + $0x1c0] sm:$0xff]
    %v111 = vld [vmem:[#allocation5 + $0x1c8] sm:$0xff]
    %v112 = vld [vmem:[#allocation5 + $0x1d0] sm:$0xff]
    %v113 = vld [vmem:[#allocation5 + $0x1d8] sm:$0xff]
    %v114 = vld [vmem:[#allocation5 + $0x1e0] sm:$0xff]
    %v115 = vld [vmem:[#allocation5 + $0x1e8] sm:$0xff]
    %v116 = vld [vmem:[#allocation5 + $0x1f0] sm:$0xff]
    %v117 = vld [vmem:[#allocation5 + $0x1f8] sm:$0xff]
    %v118 = vld [vmem:[#allocation5 + $0x200] sm:$0xff]
    %v119 = vld [vmem:[#allocation5 + $0x208] sm:$0xff]
    %v120 = vld [vmem:[#allocation5 + $0x210] sm:$0xff]
    %v121 = vld [vmem:[#allocation5 + $0x218] sm:$0xff]
    %v122 = vld [vmem:[#allocation5 + $0x220] sm:$0xff]
    %v123 = vld [vmem:[#allocation5 + $0x228] sm:$0xff]
    %v124 = vld [vmem:[#allocation5 + $0x230] sm:$0xff]
    %v125 = vld [vmem:[#allocation5 + $0x238] sm:$0xff]
    %v126 = vld [vmem:[#allocation5 + $0x240] sm:$0xff]
    %v127 = vld [vmem:[#allocation5 + $0x248] sm:$0xff]
    %v128 = vld [vmem:[#allocation5 + $0x250] sm:$0xff]
    %v129 = vld [vmem:[#allocation5 + $0x258] sm:$0xff]
    %v130 = vld [vmem:[#allocation5 + $0x260] sm:$0xff]
    %v131 = vld [vmem:[#allocation5 + $0x268] sm:$0xff]
    %v132 = vld [vmem:[#allocation5 + $0x270] sm:$0xff]
    %v133 = vld [vmem:[#allocation5 + $0x278] sm:$0xff]
    %v134 = vld [vmem:[#allocation5 + $0x280] sm:$0xff]
    %v135 = vld [vmem:[#allocation5 + $0x288] sm:$0xff]
    %v136 = vld [vmem:[#allocation5 + $0x290] sm:$0xff]
    %v137 = vld [vmem:[#allocation5 + $0x298] sm:$0xff]
    %v138 = vld [vmem:[#allocation5 + $0x2a0] sm:$0xff]
    %v139 = vld [vmem:[#allocation5 + $0x2a8] sm:$0xff]
    %v140 = vld [vmem:[#allocation5 + $0x2b0] sm:$0xff]
    %v141 = vld [vmem:[#allocation5 + $0x2b8] sm:$0xff]
    %v142 = vld [vmem:[#allocation5 + $0x2c0] sm:$0xff]
    %v143 = vld [vmem:[#allocation5 + $0x2c8] sm:$0xff]
    %v144 = vld [vmem:[#allocation5 + $0x2d0] sm:$0xff]
    %v145 = vld [vmem:[#allocation5 + $0x2d8] sm:$0xff]
    %v146 = vld [vmem:[#allocation5 + $0x2e0] sm:$0xff]
    %v147 = vld [vmem:[#allocation5 + $0x2e8] sm:$0xff]
    %v148 = vld [vmem:[#allocation5 + $0x2f0] sm:$0xff]
    %v149 = vld [vmem:[#allocation5 + $0x2f8] sm:$0xff]
    %v150 = vld [vmem:[#allocation5 + $0x300] sm:$0x33]
    %v151 = vld [vmem:[#allocation5 + $0x308] sm:$0x33]
    %v152 = vld [vmem:[#allocation5 + $0x310] sm:$0x33]
    %v153 = vld [vmem:[#allocation5 + $0x318] sm:$0x33]
    %v154 = vld [vmem:[#allocation5 + $0x320] sm:$0x33]
    %v155 = vld [vmem:[#allocation5 + $0x328] sm:$0x33]
    %v156 = vld [vmem:[#allocation5 + $0x330] sm:$0x33]
    %v157 = vld [vmem:[#allocation5 + $0x338] sm:$0x33]
    %v158 = vld [vmem:[#allocation7] sm:$0xff]
    %v159 = vld [vmem:[#allocation7 + $0x8] sm:$0xff]
    %v162 = vlaneseq
    %v163 = vshrl.u32 %v162, 7
    %v164 = vsub.s32 0, %v163
    %v165 = vrot.slane %v158, %v164
    %v166 = vlaneseq
    %v167 = vshrl.u32 %v166, 7
    %v168 = vsub.s32 1, %v167
    %v169 = vrot.slane %v158, %v168
    %v170 = vlaneseq
    %v171 = vshrl.u32 %v170, 7
    %v172 = vsub.s32 2, %v171
    %v173 = vrot.slane %v158, %v172
    %v174 = vlaneseq
    %v175 = vshrl.u32 %v174, 7
    %v176 = vsub.s32 3, %v175
    %v177 = vrot.slane %v158, %v176
    %v178 = vlaneseq
    %v179 = vshrl.u32 %v178, 7
    %v180 = vsub.s32 4, %v179
    %v181 = vrot.slane %v158, %v180
    %v182 = vlaneseq
    %v183 = vshrl.u32 %v182, 7
    %v184 = vsub.s32 5, %v183
    %v185 = vrot.slane %v158, %v184
    %v186 = vlaneseq
    %v187 = vshrl.u32 %v186, 7
    %v188 = vsub.s32 6, %v187
    %v189 = vrot.slane %v158, %v188
    %v190 = vlaneseq
    %v191 = vshrl.u32 %v190, 7
    %v192 = vsub.s32 7, %v191
    %v193 = vrot.slane %v158, %v192
    %v194 = vlaneseq
    %v195 = vshrl.u32 %v194, 7
    %v196 = vsub.s32 0, %v195
    %v197 = vrot.slane %v159, %v196
    %v198 = vlaneseq
    %v199 = vshrl.u32 %v198, 7
    %v200 = vsub.s32 1, %v199
    %v201 = vrot.slane %v159, %v200
    %v202 = vlaneseq
    %v203 = vshrl.u32 %v202, 7
    %v204 = vsub.s32 2, %v203
    %v205 = vrot.slane %v159, %v204
    %v206 = vlaneseq
    %v207 = vshrl.u32 %v206, 7
    %v208 = vsub.s32 3, %v207
    %v209 = vrot.slane %v159, %v208
    %v210 = vlaneseq
    %v211 = vshrl.u32 %v210, 7
    %v212 = vsub.s32 4, %v211
    %v213 = vrot.slane %v159, %v212
    %v214 = vlaneseq
    %v215 = vshrl.u32 %v214, 7
    %v216 = vsub.s32 5, %v215
    %v217 = vrot.slane %v159, %v216
    %v218 = vlaneseq
    %v219 = vshrl.u32 %v218, 7
    %v220 = vsub.s32 6, %v219
    %v221 = vrot.slane %v159, %v220
    %v222 = vlaneseq
    %v223 = vshrl.u32 %v222, 7
    %v224 = vsub.s32 7, %v223
    %v225 = vrot.slane %v159, %v224
    %v346 = vunpack.c.l.b16 %v54
    %v347 = vunpack.c.h.b16 %v54
    %v348 = vunpack.c.l.b16 %v55
    %v349 = vunpack.c.h.b16 %v55
    %v350 = vunpack.c.l.b16 %v56
    %v351 = vunpack.c.h.b16 %v56
    %v352 = vunpack.c.l.b16 %v57
    %v353 = vunpack.c.h.b16 %v57
    %v354 = vunpack.c.l.b16 %v58
    %v355 = vunpack.c.h.b16 %v58
    %v356 = vunpack.c.l.b16 %v59
    %v357 = vunpack.c.h.b16 %v59
    %v358 = vunpack.c.l.b16 %v60
    %v359 = vunpack.c.h.b16 %v60
    %v360 = vunpack.c.l.b16 %v61
    %v361 = vunpack.c.h.b16 %v61
    %v362 = vunpack.c.l.b16 %v62
    %v363 = vunpack.c.h.b16 %v62
    %v364 = vunpack.c.l.b16 %v63
    %v365 = vunpack.c.h.b16 %v63
    %v366 = vunpack.c.l.b16 %v64
    %v367 = vunpack.c.h.b16 %v64
    %v368 = vunpack.c.l.b16 %v65
    %v369 = vunpack.c.h.b16 %v65
    %v370 = vunpack.c.l.b16 %v66
    %v371 = vunpack.c.h.b16 %v66
    %v372 = vunpack.c.l.b16 %v67
    %v373 = vunpack.c.h.b16 %v67
    %v374 = vunpack.c.l.b16 %v68
    %v375 = vunpack.c.h.b16 %v68
    %v376 = vunpack.c.l.b16 %v69
    %v377 = vunpack.c.h.b16 %v69
    %v378 = vunpack.c.l.b16 %v70
    %v379 = vunpack.c.h.b16 %v70
    %v380 = vunpack.c.l.b16 %v71
    %v381 = vunpack.c.h.b16 %v71
    %v382 = vunpack.c.l.b16 %v72
    %v383 = vunpack.c.h.b16 %v72
    %v384 = vunpack.c.l.b16 %v73
    %v385 = vunpack.c.h.b16 %v73
    %v386 = vunpack.c.l.b16 %v74
    %v387 = vunpack.c.h.b16 %v74
    %v388 = vunpack.c.l.b16 %v75
    %v389 = vunpack.c.h.b16 %v75
    %v390 = vunpack.c.l.b16 %v76
    %v391 = vunpack.c.h.b16 %v76
    %v392 = vunpack.c.l.b16 %v77
    %v393 = vunpack.c.h.b16 %v77
    %v394 = vunpack.c.l.b16 %v78
    %v395 = vunpack.c.h.b16 %v78
    %v396 = vunpack.c.l.b16 %v79
    %v397 = vunpack.c.h.b16 %v79
    %v398 = vunpack.c.l.b16 %v80
    %v399 = vunpack.c.h.b16 %v80
    %v400 = vunpack.c.l.b16 %v81
    %v401 = vunpack.c.h.b16 %v81
    %v402 = vunpack.c.l.b16 %v82
    %v403 = vunpack.c.h.b16 %v82
    %v404 = vunpack.c.l.b16 %v83
    %v405 = vunpack.c.h.b16 %v83
    %v406 = vunpack.c.l.b16 %v84
    %v407 = vunpack.c.h.b16 %v84
    %v408 = vunpack.c.l.b16 %v85
    %v409 = vunpack.c.h.b16 %v85
    %v410 = vunpack.c.l.b16 %v86
    %v411 = vunpack.c.h.b16 %v86
    %v412 = vunpack.c.l.b16 %v87
    %v413 = vunpack.c.h.b16 %v87
    %v414 = vunpack.c.l.b16 %v88
    %v415 = vunpack.c.h.b16 %v88
    %v416 = vunpack.c.l.b16 %v89
    %v417 = vunpack.c.h.b16 %v89
    %v418 = vunpack.c.l.b16 %v90
    %v419 = vunpack.c.h.b16 %v90
    %v420 = vunpack.c.l.b16 %v91
    %v421 = vunpack.c.h.b16 %v91
    %v422 = vunpack.c.l.b16 %v92
    %v423 = vunpack.c.h.b16 %v92
    %v424 = vunpack.c.l.b16 %v93
    %v425 = vunpack.c.h.b16 %v93
    %v426 = vunpack.c.l.b16 %v94
    %v427 = vunpack.c.h.b16 %v94
    %v428 = vunpack.c.l.b16 %v95
    %v429 = vunpack.c.h.b16 %v95
    %v430 = vunpack.c.l.b16 %v96
    %v431 = vunpack.c.h.b16 %v96
    %v432 = vunpack.c.l.b16 %v97
    %v433 = vunpack.c.h.b16 %v97
    %v434 = vunpack.c.l.b16 %v98
    %v435 = vunpack.c.h.b16 %v98
    %v436 = vunpack.c.l.b16 %v99
    %v437 = vunpack.c.h.b16 %v99
    %v438 = vunpack.c.l.b16 %v100
    %v439 = vunpack.c.h.b16 %v100
    %v440 = vunpack.c.l.b16 %v101
    %v441 = vunpack.c.h.b16 %v101
    %v442 = vunpack.c.l.b16 %v102
    %v443 = vunpack.c.h.b16 %v102
    %v444 = vunpack.c.l.b16 %v103
    %v445 = vunpack.c.h.b16 %v103
    %v446 = vunpack.c.l.b16 %v104
    %v447 = vunpack.c.h.b16 %v104
    %v448 = vunpack.c.l.b16 %v105
    %v449 = vunpack.c.h.b16 %v105
    %v450 = vunpack.c.l.b16 %v106
    %v451 = vunpack.c.h.b16 %v106
    %v452 = vunpack.c.l.b16 %v107
    %v453 = vunpack.c.h.b16 %v107
    %v454 = vunpack.c.l.b16 %v108
    %v455 = vunpack.c.h.b16 %v108
    %v456 = vunpack.c.l.b16 %v109
    %v457 = vunpack.c.h.b16 %v109
    %v458 = vunpack.c.l.b16 %v110
    %v459 = vunpack.c.h.b16 %v110
    %v460 = vunpack.c.l.b16 %v111
    %v461 = vunpack.c.h.b16 %v111
    %v462 = vunpack.c.l.b16 %v112
    %v463 = vunpack.c.h.b16 %v112
    %v464 = vunpack.c.l.b16 %v113
    %v465 = vunpack.c.h.b16 %v113
    %v466 = vunpack.c.l.b16 %v114
    %v467 = vunpack.c.h.b16 %v114
    %v468 = vunpack.c.l.b16 %v115
    %v469 = vunpack.c.h.b16 %v115
    %v470 = vunpack.c.l.b16 %v116
    %v471 = vunpack.c.h.b16 %v116
    %v472 = vunpack.c.l.b16 %v117
    %v473 = vunpack.c.h.b16 %v117
    %v474 = vunpack.c.l.b16 %v118
    %v475 = vunpack.c.h.b16 %v118
    %v476 = vunpack.c.l.b16 %v119
    %v477 = vunpack.c.h.b16 %v119
    %v478 = vunpack.c.l.b16 %v120
    %v479 = vunpack.c.h.b16 %v120
    %v480 = vunpack.c.l.b16 %v121
    %v481 = vunpack.c.h.b16 %v121
    %v482 = vunpack.c.l.b16 %v122
    %v483 = vunpack.c.h.b16 %v122
    %v484 = vunpack.c.l.b16 %v123
    %v485 = vunpack.c.h.b16 %v123
    %v486 = vunpack.c.l.b16 %v124
    %v487 = vunpack.c.h.b16 %v124
    %v488 = vunpack.c.l.b16 %v125
    %v489 = vunpack.c.h.b16 %v125
    %v490 = vunpack.c.l.b16 %v126
    %v491 = vunpack.c.h.b16 %v126
    %v492 = vunpack.c.l.b16 %v127
    %v493 = vunpack.c.h.b16 %v127
    %v494 = vunpack.c.l.b16 %v128
    %v495 = vunpack.c.h.b16 %v128
    %v496 = vunpack.c.l.b16 %v129
    %v497 = vunpack.c.h.b16 %v129
    %v498 = vunpack.c.l.b16 %v130
    %v499 = vunpack.c.h.b16 %v130
    %v500 = vunpack.c.l.b16 %v131
    %v501 = vunpack.c.h.b16 %v131
    %v502 = vunpack.c.l.b16 %v132
    %v503 = vunpack.c.h.b16 %v132
    %v504 = vunpack.c.l.b16 %v133
    %v505 = vunpack.c.h.b16 %v133
    %v506 = vunpack.c.l.b16 %v134
    %v507 = vunpack.c.h.b16 %v134
    %v508 = vunpack.c.l.b16 %v135
    %v509 = vunpack.c.h.b16 %v135
    %v510 = vunpack.c.l.b16 %v136
    %v511 = vunpack.c.h.b16 %v136
    %v512 = vunpack.c.l.b16 %v137
    %v513 = vunpack.c.h.b16 %v137
    %v514 = vunpack.c.l.b16 %v138
    %v515 = vunpack.c.h.b16 %v138
    %v516 = vunpack.c.l.b16 %v139
    %v517 = vunpack.c.h.b16 %v139
    %v518 = vunpack.c.l.b16 %v140
    %v519 = vunpack.c.h.b16 %v140
    %v520 = vunpack.c.l.b16 %v141
    %v521 = vunpack.c.h.b16 %v141
    %v522 = vunpack.c.l.b16 %v142
    %v523 = vunpack.c.h.b16 %v142
    %v524 = vunpack.c.l.b16 %v143
    %v525 = vunpack.c.h.b16 %v143
    %v526 = vunpack.c.l.b16 %v144
    %v527 = vunpack.c.h.b16 %v144
    %v528 = vunpack.c.l.b16 %v145
    %v529 = vunpack.c.h.b16 %v145
    %v530 = vunpack.c.l.b16 %v146
    %v531 = vunpack.c.h.b16 %v146
    %v532 = vunpack.c.l.b16 %v147
    %v533 = vunpack.c.h.b16 %v147
    %v534 = vunpack.c.l.b16 %v148
    %v535 = vunpack.c.h.b16 %v148
    %v536 = vunpack.c.l.b16 %v149
    %v537 = vunpack.c.h.b16 %v149
    %v538 = vunpack.c.l.b16 %v150
    %v539 = vunpack.c.h.b16 %v150
    %v540 = vunpack.c.l.b16 %v151
    %v541 = vunpack.c.h.b16 %v151
    %v542 = vunpack.c.l.b16 %v152
    %v543 = vunpack.c.h.b16 %v152
    %v544 = vunpack.c.l.b16 %v153
    %v545 = vunpack.c.h.b16 %v153
    %v546 = vunpack.c.l.b16 %v154
    %v547 = vunpack.c.h.b16 %v154
    %v548 = vunpack.c.l.b16 %v155
    %v549 = vunpack.c.h.b16 %v155
    %v550 = vunpack.c.l.b16 %v156
    %v551 = vunpack.c.h.b16 %v156
    %v552 = vunpack.c.l.b16 %v157
    %v553 = vunpack.c.h.b16 %v157
    %v554 = vpack.c.b16 %v362, %v346
    %v555 = vpack.c.b16 %v363, %v347
    %v556 = vpack.c.b16 %v364, %v348
    %v557 = vpack.c.b16 %v365, %v349
    %v558 = vpack.c.b16 %v366, %v350
    %v559 = vpack.c.b16 %v367, %v351
    %v560 = vpack.c.b16 %v368, %v352
    %v561 = vpack.c.b16 %v369, %v353
    %v562 = vpack.c.b16 %v370, %v354
    %v563 = vpack.c.b16 %v371, %v355
    %v564 = vpack.c.b16 %v372, %v356
    %v565 = vpack.c.b16 %v373, %v357
    %v566 = vpack.c.b16 %v374, %v358
    %v567 = vpack.c.b16 %v375, %v359
    %v568 = vpack.c.b16 %v376, %v360
    %v569 = vpack.c.b16 %v377, %v361
    %v570 = vpack.c.b16 %v394, %v378
    %v571 = vpack.c.b16 %v395, %v379
    %v572 = vpack.c.b16 %v396, %v380
    %v573 = vpack.c.b16 %v397, %v381
    %v574 = vpack.c.b16 %v398, %v382
    %v575 = vpack.c.b16 %v399, %v383
    %v576 = vpack.c.b16 %v400, %v384
    %v577 = vpack.c.b16 %v401, %v385
    %v578 = vpack.c.b16 %v402, %v386
    %v579 = vpack.c.b16 %v403, %v387
    %v580 = vpack.c.b16 %v404, %v388
    %v581 = vpack.c.b16 %v405, %v389
    %v582 = vpack.c.b16 %v406, %v390
    %v583 = vpack.c.b16 %v407, %v391
    %v584 = vpack.c.b16 %v408, %v392
    %v585 = vpack.c.b16 %v409, %v393
    %v586 = vpack.c.b16 %v426, %v410
    %v587 = vpack.c.b16 %v427, %v411
    %v588 = vpack.c.b16 %v428, %v412
    %v589 = vpack.c.b16 %v429, %v413
    %v590 = vpack.c.b16 %v430, %v414
    %v591 = vpack.c.b16 %v431, %v415
    %v592 = vpack.c.b16 %v432, %v416
    %v593 = vpack.c.b16 %v433, %v417
    %v594 = vpack.c.b16 %v434, %v418
    %v595 = vpack.c.b16 %v435, %v419
    %v596 = vpack.c.b16 %v436, %v420
    %v597 = vpack.c.b16 %v437, %v421
    %v598 = vpack.c.b16 %v438, %v422
    %v599 = vpack.c.b16 %v439, %v423
    %v600 = vpack.c.b16 %v440, %v424
    %v601 = vpack.c.b16 %v441, %v425
    %v602 = vpack.c.b16 %v458, %v442
    %v603 = vpack.c.b16 %v459, %v443
    %v604 = vpack.c.b16 %v460, %v444
    %v605 = vpack.c.b16 %v461, %v445
    %v606 = vpack.c.b16 %v462, %v446
    %v607 = vpack.c.b16 %v463, %v447
    %v608 = vpack.c.b16 %v464, %v448
    %v609 = vpack.c.b16 %v465, %v449
    %v610 = vpack.c.b16 %v466, %v450
    %v611 = vpack.c.b16 %v467, %v451
    %v612 = vpack.c.b16 %v468, %v452
    %v613 = vpack.c.b16 %v469, %v453
    %v614 = vpack.c.b16 %v470, %v454
    %v615 = vpack.c.b16 %v471, %v455
    %v616 = vpack.c.b16 %v472, %v456
    %v617 = vpack.c.b16 %v473, %v457
    %v618 = vpack.c.b16 %v490, %v474
    %v619 = vpack.c.b16 %v491, %v475
    %v620 = vpack.c.b16 %v492, %v476
    %v621 = vpack.c.b16 %v493, %v477
    %v622 = vpack.c.b16 %v494, %v478
    %v623 = vpack.c.b16 %v495, %v479
    %v624 = vpack.c.b16 %v496, %v480
    %v625 = vpack.c.b16 %v497, %v481
    %v626 = vpack.c.b16 %v498, %v482
    %v627 = vpack.c.b16 %v499, %v483
    %v628 = vpack.c.b16 %v500, %v484
    %v629 = vpack.c.b16 %v501, %v485
    %v630 = vpack.c.b16 %v502, %v486
    %v631 = vpack.c.b16 %v503, %v487
    %v632 = vpack.c.b16 %v504, %v488
    %v633 = vpack.c.b16 %v505, %v489
    %v634 = vpack.c.b16 %v522, %v506
    %v635 = vpack.c.b16 %v523, %v507
    %v636 = vpack.c.b16 %v524, %v508
    %v637 = vpack.c.b16 %v525, %v509
    %v638 = vpack.c.b16 %v526, %v510
    %v639 = vpack.c.b16 %v527, %v511
    %v640 = vpack.c.b16 %v528, %v512
    %v641 = vpack.c.b16 %v529, %v513
    %v642 = vpack.c.b16 %v530, %v514
    %v643 = vpack.c.b16 %v531, %v515
    %v644 = vpack.c.b16 %v532, %v516
    %v645 = vpack.c.b16 %v533, %v517
    %v646 = vpack.c.b16 %v534, %v518
    %v647 = vpack.c.b16 %v535, %v519
    %v648 = vpack.c.b16 %v536, %v520
    %v649 = vpack.c.b16 %v537, %v521
    %v650 = vpack.c.b16 %v538, %v538
    %v651 = vpack.c.b16 %v539, %v539
    %v652 = vpack.c.b16 %v540, %v540
    %v653 = vpack.c.b16 %v541, %v541
    %v654 = vpack.c.b16 %v542, %v542
    %v655 = vpack.c.b16 %v543, %v543
    %v656 = vpack.c.b16 %v544, %v544
    %v657 = vpack.c.b16 %v545, %v545
    %v658 = vpack.c.b16 %v546, %v546
    %v659 = vpack.c.b16 %v547, %v547
    %v660 = vpack.c.b16 %v548, %v548
    %v661 = vpack.c.b16 %v549, %v549
    %v662 = vpack.c.b16 %v550, %v550
    %v663 = vpack.c.b16 %v551, %v551
    %v664 = vpack.c.b16 %v552, %v552
    %v665 = vpack.c.b16 %v553, %v553
    %vm762 = vcmask 818176
    %v764 = vsel %vm762, %v53, 0
    %vm766 = vcmask 1041408
    %v768 = vsel %vm766, %v650, 0
    %v771 = vsel %vm766, %v651, 0
    %v774 = vsel %vm766, %v652, 0
    %v777 = vsel %vm766, %v653, 0
    %v780 = vsel %vm766, %v654, 0
    %v783 = vsel %vm766, %v655, 0
    %v786 = vsel %vm766, %v656, 0
    %v789 = vsel %vm766, %v657, 0
    %v792 = vsel %vm766, %v658, 0
    %v795 = vsel %vm766, %v659, 0
    %v798 = vsel %vm766, %v660, 0
    %v801 = vsel %vm766, %v661, 0
    %v804 = vsel %vm766, %v662, 0
    %v807 = vsel %vm766, %v663, 0
    %v810 = vsel %vm766, %v664, 0
    %v813 = vsel %vm766, %v665, 0
    %815 = vmatprep.subr.bf16.mxu0 %v555
    %816 = vmatpush1.bf16.msra.mxu0 %v554
    %817 = vmatprep.subr.bf16.mxu0 %v571
    %818 = vmatpush1.bf16.msra.mxu0 %v570
    %819 = vmatprep.subr.bf16.mxu0 %v587
    %820 = vmatpush1.bf16.msra.mxu0 %v586
    %821 = vmatprep.subr.bf16.mxu0 %v603
    %822 = vmatpush1.bf16.msra.mxu0 %v602
    %823 = vmatprep.subr.bf16.mxu0 %v619
    %824 = vmatpush1.bf16.msra.mxu0 %v618
    %825 = vmatprep.subr.bf16.mxu0 %v635
    %826 = vmatpush1.bf16.msra.mxu0 %v634
    %827 = vmatprep.subr.bf16.mxu0 %v771
    %828 = vmatpush1.bf16.msra.mxu0 %v768
    %829 = vmatprep.subr.bf16.mxu0 0
    %830 = vmatpush1.bf16.msra.mxu0 0
    %831 = vmatprep.subr.bf16.mxu0 0
    %832 = vmatpush1.bf16.msra.mxu0 0
    %833 = vmatprep.subr.bf16.mxu0 0
    %834 = vmatpush1.bf16.msra.mxu0 0
    %835 = vmatprep.subr.bf16.mxu0 0
    %836 = vmatpush1.bf16.msra.mxu0 0
    %837 = vmatprep.subr.bf16.mxu0 0
    %838 = vmatpush1.bf16.msra.mxu0 0
    %839 = vmatprep.subr.bf16.mxu0 0
    %840 = vmatpush1.bf16.msra.mxu0 0
    %841 = vmatprep.subr.bf16.mxu0 0
    %842 = vmatpush1.bf16.msra.mxu0 0
    %843 = vmatprep.subr.bf16.mxu0 0
    %844 = vmatpush1.bf16.msra.mxu0 0
    %845 = vmatprep.subr.bf16.mxu0 0
    %846 = vmatpush1.bf16.msra.mxu0 0
    %847 = vmatprep.mubr.bf16.mxu0 0
    %848 = vmatmul.mubr.bf16.gmra.mrb[0].mxu0 %v764
    %v849 = vpop.f32.mrb[0].mxu0
    %v850 = vadd.f32 %v165, %v849
    %v851 = vpop.f32.mrb[0].mxu0
    %v852 = vadd.f32 %v169, %v851
    %v853 = vpop.f32.mrb[0].mxu0
    %v854 = vpop.f32.mrb[0].mxu0
    %855 = vdwg.mxu0
    %856 = vmatprep.subr.bf16.mxu0 %v557
    %857 = vmatpush1.bf16.msra.mxu0 %v556
    %858 = vmatprep.subr.bf16.mxu0 %v573
    %859 = vmatpush1.bf16.msra.mxu0 %v572
    %860 = vmatprep.subr.bf16.mxu0 %v589
    %861 = vmatpush1.bf16.msra.mxu0 %v588
    %862 = vmatprep.subr.bf16.mxu0 %v605
    %863 = vmatpush1.bf16.msra.mxu0 %v604
    %864 = vmatprep.subr.bf16.mxu0 %v621
    %865 = vmatpush1.bf16.msra.mxu0 %v620
    %866 = vmatprep.subr.bf16.mxu0 %v637
    %867 = vmatpush1.bf16.msra.mxu0 %v636
    %868 = vmatprep.subr.bf16.mxu0 %v777
    %869 = vmatpush1.bf16.msra.mxu0 %v774
    %870 = vmatprep.subr.bf16.mxu0 0
    %871 = vmatpush1.bf16.msra.mxu0 0
    %872 = vmatprep.subr.bf16.mxu0 0
    %873 = vmatpush1.bf16.msra.mxu0 0
    %874 = vmatprep.subr.bf16.mxu0 0
    %875 = vmatpush1.bf16.msra.mxu0 0
    %876 = vmatprep.subr.bf16.mxu0 0
    %877 = vmatpush1.bf16.msra.mxu0 0
    %878 = vmatprep.subr.bf16.mxu0 0
    %879 = vmatpush1.bf16.msra.mxu0 0
    %880 = vmatprep.subr.bf16.mxu0 0
    %881 = vmatpush1.bf16.msra.mxu0 0
    %882 = vmatprep.subr.bf16.mxu0 0
    %883 = vmatpush1.bf16.msra.mxu0 0
    %884 = vmatprep.subr.bf16.mxu0 0
    %885 = vmatpush1.bf16.msra.mxu0 0
    %886 = vmatprep.subr.bf16.mxu0 0
    %887 = vmatpush1.bf16.msra.mxu0 0
    %888 = vmatprep.mubr.bf16.mxu0 0
    %889 = vmatmul.mubr.bf16.gmra.mrb[0].mxu0 %v764
    %v890 = vpop.f32.mrb[0].mxu0
    %v891 = vadd.f32 %v173, %v890
    %v892 = vpop.f32.mrb[0].mxu0
    %v893 = vadd.f32 %v177, %v892
    %v894 = vpop.f32.mrb[0].mxu0
    %v895 = vpop.f32.mrb[0].mxu0
    %896 = vdwg.mxu0
    %897 = vmatprep.subr.bf16.mxu0 %v559
    %898 = vmatpush1.bf16.msra.mxu0 %v558
    %899 = vmatprep.subr.bf16.mxu0 %v575
    %900 = vmatpush1.bf16.msra.mxu0 %v574
    %901 = vmatprep.subr.bf16.mxu0 %v591
    %902 = vmatpush1.bf16.msra.mxu0 %v590
    %903 = vmatprep.subr.bf16.mxu0 %v607
    %904 = vmatpush1.bf16.msra.mxu0 %v606
    %905 = vmatprep.subr.bf16.mxu0 %v623
    %906 = vmatpush1.bf16.msra.mxu0 %v622
    %907 = vmatprep.subr.bf16.mxu0 %v639
    %908 = vmatpush1.bf16.msra.mxu0 %v638
    %909 = vmatprep.subr.bf16.mxu0 %v783
    %910 = vmatpush1.bf16.msra.mxu0 %v780
    %911 = vmatprep.subr.bf16.mxu0 0
    %912 = vmatpush1.bf16.msra.mxu0 0
    %913 = vmatprep.subr.bf16.mxu0 0
    %914 = vmatpush1.bf16.msra.mxu0 0
    %915 = vmatprep.subr.bf16.mxu0 0
    %916 = vmatpush1.bf16.msra.mxu0 0
    %917 = vmatprep.subr.bf16.mxu0 0
    %918 = vmatpush1.bf16.msra.mxu0 0
    %919 = vmatprep.subr.bf16.mxu0 0
    %920 = vmatpush1.bf16.msra.mxu0 0
    %921 = vmatprep.subr.bf16.mxu0 0
    %922 = vmatpush1.bf16.msra.mxu0 0
    %923 = vmatprep.subr.bf16.mxu0 0
    %924 = vmatpush1.bf16.msra.mxu0 0
    %925 = vmatprep.subr.bf16.mxu0 0
    %926 = vmatpush1.bf16.msra.mxu0 0
    %927 = vmatprep.subr.bf16.mxu0 0
    %928 = vmatpush1.bf16.msra.mxu0 0
    %929 = vmatprep.mubr.bf16.mxu0 0
    %930 = vmatmul.mubr.bf16.gmra.mrb[0].mxu0 %v764
    %v931 = vpop.f32.mrb[0].mxu0
    %v932 = vadd.f32 %v181, %v931
    %v933 = vpop.f32.mrb[0].mxu0
    %v934 = vadd.f32 %v185, %v933
    %v935 = vpop.f32.mrb[0].mxu0
    %v936 = vpop.f32.mrb[0].mxu0
    %937 = vdwg.mxu0
    %938 = vmatprep.subr.bf16.mxu0 %v561
    %939 = vmatpush1.bf16.msra.mxu0 %v560
    %940 = vmatprep.subr.bf16.mxu0 %v577
    %941 = vmatpush1.bf16.msra.mxu0 %v576
    %942 = vmatprep.subr.bf16.mxu0 %v593
    %943 = vmatpush1.bf16.msra.mxu0 %v592
    %944 = vmatprep.subr.bf16.mxu0 %v609
    %945 = vmatpush1.bf16.msra.mxu0 %v608
    %946 = vmatprep.subr.bf16.mxu0 %v625
    %947 = vmatpush1.bf16.msra.mxu0 %v624
    %948 = vmatprep.subr.bf16.mxu0 %v641
    %949 = vmatpush1.bf16.msra.mxu0 %v640
    %950 = vmatprep.subr.bf16.mxu0 %v789
    %951 = vmatpush1.bf16.msra.mxu0 %v786
    %952 = vmatprep.subr.bf16.mxu0 0
    %953 = vmatpush1.bf16.msra.mxu0 0
    %954 = vmatprep.subr.bf16.mxu0 0
    %955 = vmatpush1.bf16.msra.mxu0 0
    %956 = vmatprep.subr.bf16.mxu0 0
    %957 = vmatpush1.bf16.msra.mxu0 0
    %958 = vmatprep.subr.bf16.mxu0 0
    %959 = vmatpush1.bf16.msra.mxu0 0
    %960 = vmatprep.subr.bf16.mxu0 0
    %961 = vmatpush1.bf16.msra.mxu0 0
    %962 = vmatprep.subr.bf16.mxu0 0
    %963 = vmatpush1.bf16.msra.mxu0 0
    %964 = vmatprep.subr.bf16.mxu0 0
    %965 = vmatpush1.bf16.msra.mxu0 0
    %966 = vmatprep.subr.bf16.mxu0 0
    %967 = vmatpush1.bf16.msra.mxu0 0
    %968 = vmatprep.subr.bf16.mxu0 0
    %969 = vmatpush1.bf16.msra.mxu0 0
    %970 = vmatprep.mubr.bf16.mxu0 0
    %971 = vmatmul.mubr.bf16.gmra.mrb[0].mxu0 %v764
    %v972 = vpop.f32.mrb[0].mxu0
    %v973 = vadd.f32 %v189, %v972
    %v974 = vpop.f32.mrb[0].mxu0
    %v975 = vadd.f32 %v193, %v974
    %v976 = vpop.f32.mrb[0].mxu0
    %v977 = vpop.f32.mrb[0].mxu0
    %978 = vdwg.mxu0
    %979 = vmatprep.subr.bf16.mxu0 %v563
    %980 = vmatpush1.bf16.msra.mxu0 %v562
    %981 = vmatprep.subr.bf16.mxu0 %v579
    %982 = vmatpush1.bf16.msra.mxu0 %v578
    %983 = vmatprep.subr.bf16.mxu0 %v595
    %984 = vmatpush1.bf16.msra.mxu0 %v594
    %985 = vmatprep.subr.bf16.mxu0 %v611
    %986 = vmatpush1.bf16.msra.mxu0 %v610
    %987 = vmatprep.subr.bf16.mxu0 %v627
    %988 = vmatpush1.bf16.msra.mxu0 %v626
    %989 = vmatprep.subr.bf16.mxu0 %v643
    %990 = vmatpush1.bf16.msra.mxu0 %v642
    %991 = vmatprep.subr.bf16.mxu0 %v795
    %992 = vmatpush1.bf16.msra.mxu0 %v792
    %993 = vmatprep.subr.bf16.mxu0 0
    %994 = vmatpush1.bf16.msra.mxu0 0
    %995 = vmatprep.subr.bf16.mxu0 0
    %996 = vmatpush1.bf16.msra.mxu0 0
    %997 = vmatprep.subr.bf16.mxu0 0
    %998 = vmatpush1.bf16.msra.mxu0 0
    %999 = vmatprep.subr.bf16.mxu0 0
    %1000 = vmatpush1.bf16.msra.mxu0 0
    %1001 = vmatprep.subr.bf16.mxu0 0
    %1002 = vmatpush1.bf16.msra.mxu0 0
    %1003 = vmatprep.subr.bf16.mxu0 0
    %1004 = vmatpush1.bf16.msra.mxu0 0
    %1005 = vmatprep.subr.bf16.mxu0 0
    %1006 = vmatpush1.bf16.msra.mxu0 0
    %1007 = vmatprep.subr.bf16.mxu0 0
    %1008 = vmatpush1.bf16.msra.mxu0 0
    %1009 = vmatprep.subr.bf16.mxu0 0
    %1010 = vmatpush1.bf16.msra.mxu0 0
    %1011 = vmatprep.mubr.bf16.mxu0 0
    %1012 = vmatmul.mubr.bf16.gmra.mrb[0].mxu0 %v764
    %v1013 = vpop.f32.mrb[0].mxu0
    %v1014 = vadd.f32 %v197, %v1013
    %v1015 = vpop.f32.mrb[0].mxu0
    %v1016 = vadd.f32 %v201, %v1015
    %v1017 = vpop.f32.mrb[0].mxu0
    %v1018 = vpop.f32.mrb[0].mxu0
    %1019 = vdwg.mxu0
    %1020 = vmatprep.subr.bf16.mxu0 %v565
    %1021 = vmatpush1.bf16.msra.mxu0 %v564
    %1022 = vmatprep.subr.bf16.mxu0 %v581
    %1023 = vmatpush1.bf16.msra.mxu0 %v580
    %1024 = vmatprep.subr.bf16.mxu0 %v597
    %1025 = vmatpush1.bf16.msra.mxu0 %v596
    %1026 = vmatprep.subr.bf16.mxu0 %v613
    %1027 = vmatpush1.bf16.msra.mxu0 %v612
    %1028 = vmatprep.subr.bf16.mxu0 %v629
    %1029 = vmatpush1.bf16.msra.mxu0 %v628
    %1030 = vmatprep.subr.bf16.mxu0 %v645
    %1031 = vmatpush1.bf16.msra.mxu0 %v644
    %1032 = vmatprep.subr.bf16.mxu0 %v801
    %1033 = vmatpush1.bf16.msra.mxu0 %v798
    %1034 = vmatprep.subr.bf16.mxu0 0
    %1035 = vmatpush1.bf16.msra.mxu0 0
    %1036 = vmatprep.subr.bf16.mxu0 0
    %1037 = vmatpush1.bf16.msra.mxu0 0
    %1038 = vmatprep.subr.bf16.mxu0 0
    %1039 = vmatpush1.bf16.msra.mxu0 0
    %1040 = vmatprep.subr.bf16.mxu0 0
    %1041 = vmatpush1.bf16.msra.mxu0 0
    %1042 = vmatprep.subr.bf16.mxu0 0
    %1043 = vmatpush1.bf16.msra.mxu0 0
    %1044 = vmatprep.subr.bf16.mxu0 0
    %1045 = vmatpush1.bf16.msra.mxu0 0
    %1046 = vmatprep.subr.bf16.mxu0 0
    %1047 = vmatpush1.bf16.msra.mxu0 0
    %1048 = vmatprep.subr.bf16.mxu0 0
    %1049 = vmatpush1.bf16.msra.mxu0 0
    %1050 = vmatprep.subr.bf16.mxu0 0
    %1051 = vmatpush1.bf16.msra.mxu0 0
    %1052 = vmatprep.mubr.bf16.mxu0 0
    %1053 = vmatmul.mubr.bf16.gmra.mrb[0].mxu0 %v764
    %v1054 = vpop.f32.mrb[0].mxu0
    %v1055 = vadd.f32 %v205, %v1054
    %v1056 = vpop.f32.mrb[0].mxu0
    %v1057 = vadd.f32 %v209, %v1056
    %v1058 = vpop.f32.mrb[0].mxu0
    %v1059 = vpop.f32.mrb[0].mxu0
    %1060 = vdwg.mxu0
    %1061 = vmatprep.subr.bf16.mxu0 %v567
    %1062 = vmatpush1.bf16.msra.mxu0 %v566
    %1063 = vmatprep.subr.bf16.mxu0 %v583
    %1064 = vmatpush1.bf16.msra.mxu0 %v582
    %1065 = vmatprep.subr.bf16.mxu0 %v599
    %1066 = vmatpush1.bf16.msra.mxu0 %v598
    %1067 = vmatprep.subr.bf16.mxu0 %v615
    %1068 = vmatpush1.bf16.msra.mxu0 %v614
    %1069 = vmatprep.subr.bf16.mxu0 %v631
    %1070 = vmatpush1.bf16.msra.mxu0 %v630
    %1071 = vmatprep.subr.bf16.mxu0 %v647
    %1072 = vmatpush1.bf16.msra.mxu0 %v646
    %1073 = vmatprep.subr.bf16.mxu0 %v807
    %1074 = vmatpush1.bf16.msra.mxu0 %v804
    %1075 = vmatprep.subr.bf16.mxu0 0
    %1076 = vmatpush1.bf16.msra.mxu0 0
    %1077 = vmatprep.subr.bf16.mxu0 0
    %1078 = vmatpush1.bf16.msra.mxu0 0
    %1079 = vmatprep.subr.bf16.mxu0 0
    %1080 = vmatpush1.bf16.msra.mxu0 0
    %1081 = vmatprep.subr.bf16.mxu0 0
    %1082 = vmatpush1.bf16.msra.mxu0 0
    %1083 = vmatprep.subr.bf16.mxu0 0
    %1084 = vmatpush1.bf16.msra.mxu0 0
    %1085 = vmatprep.subr.bf16.mxu0 0
    %1086 = vmatpush1.bf16.msra.mxu0 0
    %1087 = vmatprep.subr.bf16.mxu0 0
    %1088 = vmatpush1.bf16.msra.mxu0 0
    %1089 = vmatprep.subr.bf16.mxu0 0
    %1090 = vmatpush1.bf16.msra.mxu0 0
    %1091 = vmatprep.subr.bf16.mxu0 0
    %1092 = vmatpush1.bf16.msra.mxu0 0
    %1093 = vmatprep.mubr.bf16.mxu0 0
    %1094 = vmatmul.mubr.bf16.gmra.mrb[0].mxu0 %v764
    %v1095 = vpop.f32.mrb[0].mxu0
    %v1096 = vadd.f32 %v213, %v1095
    %v1097 = vpop.f32.mrb[0].mxu0
    %v1098 = vadd.f32 %v217, %v1097
    %v1099 = vpop.f32.mrb[0].mxu0
    %v1100 = vpop.f32.mrb[0].mxu0
    %1101 = vdwg.mxu0
    %1102 = vmatprep.subr.bf16.mxu0 %v569
    %1103 = vmatpush1.bf16.msra.mxu0 %v568
    %1104 = vmatprep.subr.bf16.mxu0 %v585
    %1105 = vmatpush1.bf16.msra.mxu0 %v584
    %1106 = vmatprep.subr.bf16.mxu0 %v601
    %1107 = vmatpush1.bf16.msra.mxu0 %v600
    %1108 = vmatprep.subr.bf16.mxu0 %v617
    %1109 = vmatpush1.bf16.msra.mxu0 %v616
    %1110 = vmatprep.subr.bf16.mxu0 %v633
    %1111 = vmatpush1.bf16.msra.mxu0 %v632
    %1112 = vmatprep.subr.bf16.mxu0 %v649
    %1113 = vmatpush1.bf16.msra.mxu0 %v648
    %1114 = vmatprep.subr.bf16.mxu0 %v813
    %1115 = vmatpush1.bf16.msra.mxu0 %v810
    %1116 = vmatprep.subr.bf16.mxu0 0
    %1117 = vmatpush1.bf16.msra.mxu0 0
    %1118 = vmatprep.subr.bf16.mxu0 0
    %1119 = vmatpush1.bf16.msra.mxu0 0
    %1120 = vmatprep.subr.bf16.mxu0 0
    %1121 = vmatpush1.bf16.msra.mxu0 0
    %1122 = vmatprep.subr.bf16.mxu0 0
    %1123 = vmatpush1.bf16.msra.mxu0 0
    %1124 = vmatprep.subr.bf16.mxu0 0
    %1125 = vmatpush1.bf16.msra.mxu0 0
    %1126 = vmatprep.subr.bf16.mxu0 0
    %1127 = vmatpush1.bf16.msra.mxu0 0
    %1128 = vmatprep.subr.bf16.mxu0 0
    %1129 = vmatpush1.bf16.msra.mxu0 0
    %1130 = vmatprep.subr.bf16.mxu0 0
    %1131 = vmatpush1.bf16.msra.mxu0 0
    %1132 = vmatprep.subr.bf16.mxu0 0
    %1133 = vmatpush1.bf16.msra.mxu0 0
    %1134 = vmatprep.mubr.bf16.mxu0 0
    %1135 = vmatmul.mubr.bf16.gmra.mrb[0].mxu0 %v764
    %v1136 = vpop.f32.mrb[0].mxu0
    %v1137 = vadd.f32 %v221, %v1136
    %v1138 = vpop.f32.mrb[0].mxu0
    %v1139 = vadd.f32 %v225, %v1138
    %v1140 = vpop.f32.mrb[0].mxu0
    %v1141 = vpop.f32.mrb[0].mxu0
    %1142 = vdwg.mxu0
    %vm1143 = vcmp.gt.f32.partialorder %v850, 0.0
    %vm1144 = vcmp.gt.f32.partialorder %v852, 0.0
    %vm1145 = vcmp.gt.f32.partialorder %v891, 0.0
    %vm1146 = vcmp.gt.f32.partialorder %v893, 0.0
    %vm1147 = vcmp.gt.f32.partialorder %v932, 0.0
    %vm1148 = vcmp.gt.f32.partialorder %v934, 0.0
    %vm1149 = vcmp.gt.f32.partialorder %v973, 0.0
    %vm1150 = vcmp.gt.f32.partialorder %v975, 0.0
    %vm1151 = vcmp.gt.f32.partialorder %v1014, 0.0
    %vm1152 = vcmp.gt.f32.partialorder %v1016, 0.0
    %vm1153 = vcmp.gt.f32.partialorder %v1055, 0.0
    %vm1154 = vcmp.gt.f32.partialorder %v1057, 0.0
    %vm1155 = vcmp.gt.f32.partialorder %v1096, 0.0
    %vm1156 = vcmp.gt.f32.partialorder %v1098, 0.0
    %vm1157 = vcmp.gt.f32.partialorder %v1137, 0.0
    %vm1158 = vcmp.gt.f32.partialorder %v1139, 0.0
    %v1159 = vmul.f32 %v850, 0.2
    %v1160 = vmul.f32 %v852, 0.2
    %v1161 = vmul.f32 %v891, 0.2
    %v1162 = vmul.f32 %v893, 0.2
    %v1163 = vmul.f32 %v932, 0.2
    %v1164 = vmul.f32 %v934, 0.2
    %v1165 = vmul.f32 %v973, 0.2
    %v1166 = vmul.f32 %v975, 0.2
    %v1167 = vmul.f32 %v1014, 0.2
    %v1168 = vmul.f32 %v1016, 0.2
    %v1169 = vmul.f32 %v1055, 0.2
    %v1170 = vmul.f32 %v1057, 0.2
    %v1171 = vmul.f32 %v1096, 0.2
    %v1172 = vmul.f32 %v1098, 0.2
    %v1173 = vmul.f32 %v1137, 0.2
    %v1174 = vmul.f32 %v1139, 0.2
    %v1175 = vsel %vm1143, %v850, %v1159
    %v1176 = vsel %vm1144, %v852, %v1160
    %v1177 = vsel %vm1145, %v891, %v1161
    %v1178 = vsel %vm1146, %v893, %v1162
    %v1179 = vsel %vm1147, %v932, %v1163
    %v1180 = vsel %vm1148, %v934, %v1164
    %v1181 = vsel %vm1149, %v973, %v1165
    %v1182 = vsel %vm1150, %v975, %v1166
    %v1183 = vsel %vm1151, %v1014, %v1167
    %v1184 = vsel %vm1152, %v1016, %v1168
    %v1185 = vsel %vm1153, %v1055, %v1169
    %v1186 = vsel %vm1154, %v1057, %v1170
    %v1187 = vsel %vm1155, %v1096, %v1171
    %v1188 = vsel %vm1156, %v1098, %v1172
    %v1189 = vsel %vm1157, %v1137, %v1173
    %v1190 = vsel %vm1158, %v1139, %v1174
    %v1191 = vpack.c.bf16 %v1175, %v1175
    %v1192 = vpack.c.bf16 %v1176, %v1176
    %v1193 = vpack.c.bf16 %v1177, %v1177
    %v1194 = vpack.c.bf16 %v1178, %v1178
    %v1195 = vpack.c.bf16 %v1179, %v1179
    %v1196 = vpack.c.bf16 %v1180, %v1180
    %v1197 = vpack.c.bf16 %v1181, %v1181
    %v1198 = vpack.c.bf16 %v1182, %v1182
    %v1199 = vpack.c.bf16 %v1183, %v1183
    %v1200 = vpack.c.bf16 %v1184, %v1184
    %v1201 = vpack.c.bf16 %v1185, %v1185
    %v1202 = vpack.c.bf16 %v1186, %v1186
    %v1203 = vpack.c.bf16 %v1187, %v1187
    %v1204 = vpack.c.bf16 %v1188, %v1188
    %v1205 = vpack.c.bf16 %v1189, %v1189
    %v1206 = vpack.c.bf16 %v1190, %v1190
    %v1223 = vcombine.low %v1191, %v1192
    %v1224 = vcombine.low %v1193, %v1194
    %v1225 = vcombine.low %v1195, %v1196
    %v1226 = vcombine.low %v1197, %v1198
    %v1228 = vunpack.c.l.s4 1966171168
    %v1229 = vunpack.c.0.s8 %v1228
    %v1230 = vlaneseq
    %v1231 = vshrl.u32 %v1230, 7
    %v1232 = vsub.s32 %v1229, %v1231
    %v1233 = vrot.slane %v1223, %v1232
    %v1235 = vunpack.c.l.s4 1966171168
    %v1236 = vunpack.c.0.s8 %v1235
    %v1237 = vlaneseq
    %v1238 = vshrl.u32 %v1237, 7
    %v1239 = vsub.s32 %v1236, %v1238
    %v1240 = vrot.slane %v1224, %v1239
    %v1242 = vunpack.c.l.s4 1966171168
    %v1243 = vunpack.c.0.s8 %v1242
    %v1244 = vlaneseq
    %v1245 = vshrl.u32 %v1244, 7
    %v1246 = vsub.s32 %v1243, %v1245
    %v1247 = vrot.slane %v1225, %v1246
    %v1249 = vunpack.c.l.s4 1966171168
    %v1250 = vunpack.c.0.s8 %v1249
    %v1251 = vlaneseq
    %v1252 = vshrl.u32 %v1251, 7
    %v1253 = vsub.s32 %v1250, %v1252
    %v1254 = vrot.slane %v1226, %v1253
    %v1255 = vcombine.low %v1233, %v1240
    %v1256 = vcombine.low %v1247, %v1254
    %v1258 = vunpack.c.l.s4 1966171168
    %v1259 = vunpack.c.0.s8 %v1258
    %v1260 = vlaneseq
    %v1261 = vshrl.u32 %v1260, 7
    %v1262 = vsub.s32 %v1259, %v1261
    %v1263 = vrot.slane %v1255, %v1262
    %v1265 = vunpack.c.l.s4 1966171168
    %v1266 = vunpack.c.0.s8 %v1265
    %v1267 = vlaneseq
    %v1268 = vshrl.u32 %v1267, 7
    %v1269 = vsub.s32 %v1266, %v1268
    %v1270 = vrot.slane %v1256, %v1269
    %v1271 = vcombine.low %v1263, %v1270
    %v1272 = vcombine.low %v1199, %v1200
    %v1273 = vcombine.low %v1201, %v1202
    %v1274 = vcombine.low %v1203, %v1204
    %v1275 = vcombine.low %v1205, %v1206
    %v1277 = vunpack.c.l.s4 1966171168
    %v1278 = vunpack.c.0.s8 %v1277
    %v1279 = vlaneseq
    %v1280 = vshrl.u32 %v1279, 7
    %v1281 = vsub.s32 %v1278, %v1280
    %v1282 = vrot.slane %v1272, %v1281
    %v1284 = vunpack.c.l.s4 1966171168
    %v1285 = vunpack.c.0.s8 %v1284
    %v1286 = vlaneseq
    %v1287 = vshrl.u32 %v1286, 7
    %v1288 = vsub.s32 %v1285, %v1287
    %v1289 = vrot.slane %v1273, %v1288
    %v1291 = vunpack.c.l.s4 1966171168
    %v1292 = vunpack.c.0.s8 %v1291
    %v1293 = vlaneseq
    %v1294 = vshrl.u32 %v1293, 7
    %v1295 = vsub.s32 %v1292, %v1294
    %v1296 = vrot.slane %v1274, %v1295
    %v1298 = vunpack.c.l.s4 1966171168
    %v1299 = vunpack.c.0.s8 %v1298
    %v1300 = vlaneseq
    %v1301 = vshrl.u32 %v1300, 7
    %v1302 = vsub.s32 %v1299, %v1301
    %v1303 = vrot.slane %v1275, %v1302
    %v1304 = vcombine.low %v1282, %v1289
    %v1305 = vcombine.low %v1296, %v1303
    %v1307 = vunpack.c.l.s4 1966171168
    %v1308 = vunpack.c.0.s8 %v1307
    %v1309 = vlaneseq
    %v1310 = vshrl.u32 %v1309, 7
    %v1311 = vsub.s32 %v1308, %v1310
    %v1312 = vrot.slane %v1304, %v1311
    %v1314 = vunpack.c.l.s4 1966171168
    %v1315 = vunpack.c.0.s8 %v1314
    %v1316 = vlaneseq
    %v1317 = vshrl.u32 %v1316, 7
    %v1318 = vsub.s32 %v1315, %v1317
    %v1319 = vrot.slane %v1305, %v1318
    %v1320 = vcombine.low %v1312, %v1319
    %1323 = vst [vmem:[#allocation8] sm:$0xff] %v1271
    %1324 = vst [vmem:[#allocation8 + $0x8] sm:$0xff] %v1320
    // Predicated region
    $region26: #{tpu_custom_call.1} parent=1 // pred_check
      _
    $region27: #{tpu_custom_call.1} parent=1 // pred_check_branch
      %1326 = sbr.rel (0) target = $region29
    $region28: #{tpu_custom_call.1} parent=1 // pred_region
      %s1328 = ssub.s32 256, 256
      %1329 = vsyncadd [#allocation4], %s1328
      %s1331 = sshll.u32 [#allocation8], 4
      %s1332 = int_to_ptr.vmem [resolvable:$true] %s1331
      %1334 = dma.vmem_to_hbm [thread:$0]  %s1332, 256, %s3, [#allocation4]
    $region29: #{tpu_custom_call.1} parent=1 // pred_fallthru
      _
    // Predicated region
    $region30: #{tpu_custom_call.1} parent=1 // pred_check
      _
    $region31: #{tpu_custom_call.1} parent=1 // pred_check_branch
      %1336 = sbr.rel (0) target = $region33
    $region32: #{tpu_custom_call.1} parent=1 // pred_region
      %1337 = dma.done [#allocation4], 256
    $region33: #{tpu_custom_call.1} parent=1 // pred_fallthru
      _
    %1338 = vsyncpa [#allocation3], 1
    %1339 = vsyncpa [#allocation6], 1
    %1340 = vsyncpa [#allocation4], 1

</llo_original>
